<compile_context>
chip_gen: v5e
topology: v5e:2x2
jax: 0.10.0
libtpu: 0.0.40
codegen_flags: <defaults>
</compile_context>

<pallas_src>
import functools
import math

import jax
import jax.numpy as jnp
from jax.experimental import pallas as pl
from jax.experimental.pallas import tpu as pltpu


def _get_embedding(num_embeddings, embedding_dim, padding_idx=None,
                   dtype=jnp.float32):
    """JAX port of RelativePositionalEmbedding.get_embedding (buffer-setup glue)."""
    half_dim = embedding_dim // 2
    scale = math.log(10000.0) / (half_dim - 1)
    freq = jnp.exp(jnp.arange(half_dim, dtype=jnp.float32) * (-scale))   # [half]
    pos = jnp.arange(-num_embeddings // 2, num_embeddings // 2,
                     dtype=jnp.float32)                                  # [N]
    ang = pos[:, None] * freq[None, :]                                   # [N, half]
    emb = jnp.concatenate([jnp.sin(ang), jnp.cos(ang)], axis=1)          # [N, 2*half]
    if embedding_dim % 2 == 1:
        emb = jnp.concatenate(
            [emb, jnp.zeros((num_embeddings, 1), jnp.float32)], axis=1)
    if padding_idx is not None:
        emb = emb.at[padding_idx, :].set(0.0)
    origin_shift = num_embeddings // 2 + 1
    return emb.astype(dtype), origin_shift


def _rows_copy_kernel(w_hbm_ref, out_hbm_ref, copy_sem, *, start, n_rows):
    # w_hbm_ref:   ANY [n_emb, dim]  -- full sinusoid table, stays in HBM.
    # out_hbm_ref: ANY [n_rows, dim] -- output, stays in HBM.
    # `start`/`n_rows` are trace-time Python ints (baked in via functools.partial),
    # so this lowers to a single contiguous linear DMA: rows [start, start+n_rows).
    cp = pltpu.make_async_copy(
        w_hbm_ref.at[pl.ds(start, n_rows), :], out_hbm_ref, copy_sem)
    cp.start()
    cp.wait()


def relative_positional_slice(weights, start_row, n_rows):
    """weights[start_row : start_row + n_rows, :] as a single HBM->HBM Pallas DMA
    (== weights.index_select(0, arange(start_row, start_row + n_rows)))."""
    n_emb, dim = weights.shape
    start_row = int(start_row)
    n_rows = int(n_rows)
    if start_row < 0 or start_row + n_rows > n_emb:
        # Bounds are enforced on the host: the raw-HBM DMA path has no runtime
        # check and PyTorch's index_select would raise here too.
        raise IndexError(
            f"row slice [{start_row}, {start_row + n_rows}) out of bounds "
            f"for table with {n_emb} rows")

    kernel = functools.partial(_rows_copy_kernel, start=start_row, n_rows=n_rows)
    return pl.pallas_call(
        kernel,
        out_shape=jax.ShapeDtypeStruct((n_rows, dim), weights.dtype),
        in_specs=[pl.BlockSpec(memory_space=pl.ANY)],   # table stays in HBM
        out_specs=pl.BlockSpec(memory_space=pl.ANY),    # output written directly in HBM
        scratch_shapes=[pltpu.SemaphoreType.DMA(())],
    )(weights)


class RelativePositionalEmbedding:
    """JAX/Pallas equivalent of the PyTorch module (forward semantics preserved)."""

    def __init__(self, embedding_dim, padding_idx, init_size=1024,
                 dtype=jnp.float32):
        assert init_size % 2 == 0
        self.embedding_dim = embedding_dim
        self.padding_idx = padding_idx
        # dtype=jnp.bfloat16 halves HBM traffic (kernel is pure-bandwidth bound);
        # default float32 matches the PyTorch buffer numerics exactly.
        self.dtype = dtype
        # Mirrors register_buffer('weights', ...): origin_shift = N//2 + 1 at init.
        self.weights, self.origin_shift = _get_embedding(
            init_size + 1, embedding_dim, padding_idx, dtype=dtype)

    def __call__(self, x):
        bsz, seq_len = x.shape
        max_pos = self.padding_idx + seq_len
        if max_pos > self.origin_shift:
            # Host-side buffer regrowth, mirroring the PyTorch branch exactly:
            # get_embedding's internal "+1" origin_shift is then overwritten with
            # weights.size(0)//2, same as the reference implementation.
            # TODO(synk): this mutates Python state and changes shapes per call,
            # so the module (like the PyTorch original) is not jittable as-is.
            self.weights, _ = _get_embedding(
                max_pos * 2, self.embedding_dim, self.padding_idx,
                dtype=self.dtype)
            self.origin_shift = self.weights.shape[0] // 2

        # positions = arange(-seq_len, seq_len) + origin_shift -> contiguous rows.
        start = self.origin_shift - seq_len
        end = self.origin_shift + seq_len
        if start < 0 or end > self.weights.shape[0]:
            # Boundary corner inherited from the reference (e.g. padding_idx=0,
            # seq_len == init_size//2 + 1: the regrow check doesn't trip but the
            # slice would read one row past the table; PyTorch's index_select
            # errors there).  Regrow just enough instead of issuing an OOB DMA.
            self.weights, _ = _get_embedding(
                2 * seq_len + 2, self.embedding_dim, self.padding_idx,
                dtype=self.dtype)
            self.origin_shift = self.weights.shape[0] // 2
            start = self.origin_shift - seq_len

        return relative_positional_slice(self.weights, start, 2 * seq_len)


if __name__ == "__main__":
    key = jax.random.PRNGKey(0)
    bsz, seq_len = 2, 8
    embedding_dim, padding_idx, init_size = 32, 0, 1024

    # x is only used for its shape (token ids).
    x = jax.random.randint(key, (bsz, seq_len), 0, 100, dtype=jnp.int32)

    mod = RelativePositionalEmbedding(embedding_dim, padding_idx, init_size)
    embed = jax.block_until_ready(mod(x))

    # Reference: pure-JAX gather with the same positions as the PyTorch forward.
    positions = jnp.arange(-seq_len, seq_len, dtype=jnp.int32) + mod.origin_shift
    ref = mod.weights[positions]
    assert embed.shape == (2 * seq_len, embedding_dim)
    assert embed.dtype == jnp.float32
    assert jnp.allclose(embed, ref, atol=1e-6)

    # Exercise the buffer-regrowth branch (max_pos > origin_shift) at small size.
    mod2 = RelativePositionalEmbedding(embedding_dim, padding_idx, init_size=16)
    x2 = jax.random.randint(key, (bsz, 12), 0, 100, dtype=jnp.int32)
    embed2 = jax.block_until_ready(mod2(x2))
    pos2 = jnp.arange(-12, 12, dtype=jnp.int32) + mod2.origin_shift
    assert jnp.allclose(embed2, mod2.weights[pos2], atol=1e-6)

    # Exercise the boundary guard: init_size=16 -> origin_shift=9; seq_len=9 does
    # not trip the PyTorch regrow check but would otherwise read past the table.
    mod3 = RelativePositionalEmbedding(embedding_dim, padding_idx, init_size=16)
    x3 = jnp.zeros((bsz, 9), dtype=jnp.int32)
    embed3 = jax.block_until_ready(mod3(x3))
    pos3 = jnp.arange(-9, 9, dtype=jnp.int32) + mod3.origin_shift
    assert jnp.allclose(embed3, mod3.weights[pos3], atol=1e-6)

    print("KERNEL_OK")
</pallas_src>

<mosaic_0001>
module attributes {stable_mosaic.version = 11 : i64} {
  func.func @_rows_copy_kernel(%arg0: memref<1025x32xf32, #tpu.memory_space<any>>, %arg1: memref<16x32xf32, #tpu.memory_space<any>>, %arg2: memref<!tpu.dma_semaphore, #tpu.memory_space<semaphore_mem>>) attributes {dimension_semantics = [], scalar_prefetch = 0 : i64, scratch_operands = 1 : i64, tpu.core_type = #tpu.core_type<tc>} {
    %c505_i32 = arith.constant 505 : i32
    %c0_i32 = arith.constant 0 : i32
    %0 = tpu.memref_slice %arg0[%c505_i32, %c0_i32] : memref<1025x32xf32, #tpu.memory_space<any>> -> memref<16x32xf32, #tpu.memory_space<any>>
    tpu.enqueue_dma source(%0 : memref<16x32xf32, #tpu.memory_space<any>>) target(%arg1 : memref<16x32xf32, #tpu.memory_space<any>>) target_semaphore(%arg2 : memref<!tpu.dma_semaphore, #tpu.memory_space<semaphore_mem>>)
    %c505_i32_0 = arith.constant 505 : i32
    %c0_i32_1 = arith.constant 0 : i32
    %1 = tpu.memref_slice %arg0[%c505_i32_0, %c0_i32_1] : memref<1025x32xf32, #tpu.memory_space<any>> -> memref<16x32xf32, #tpu.memory_space<any>>
    tpu.wait_dma2 semaphore(%arg2 : memref<!tpu.dma_semaphore, #tpu.memory_space<semaphore_mem>>) src(%1 : memref<16x32xf32, #tpu.memory_space<any>>) dst(%arg1 : memref<16x32xf32, #tpu.memory_space<any>>)
    return
  }
}

</mosaic_0001>

<llo_original>
// kernel: tpu_custom_call.1
$region0: #{tpu_custom_call.1}
  #allocation0 [shape = 'u32[]', space=smem, size = 0x4, offset = 0x4, fixed_abs, tag = 'smem constant byte address 0x4 - core index']
  #allocation1 [shape = 'u32[72,128]{1,0:T(1,128)}', space=vmem, size = 0x9000, scoped, tag = 'internal scratch']
  #allocation2 [shape = 's32[1]{0}', space=sflag, size = 0x4, scoped, tag = 'scratch operand']
  #allocation3 [shape = 's32[]', space=sflag, size = 0x4, offset = 0, fixed_abs, tag = 'sflag constant byte address 0x0 - dummy sync flag']
  #allocation4 [shape = 's32[]', space=sflag, size = 0x4, offset = 0, fixed_abs, tag = 'sflag constant byte address 0x0 - dummy sync flag']
  #allocation5 [shape = 'u32[]', space=smem, size = 0x4, offset = 0x44, fixed_abs, tag = 'smem constant byte address 0x44 - assertion arg 0']
  #allocation6 [shape = 'u32[]', space=smem, size = 0x4, offset = 0x48, fixed_abs, tag = 'smem constant byte address 0x48 - assertion arg 1']
  %s0 = inlined_call_operand.vmem [shape: f32[1025,32], index: 0, kind: input, shape index: {}]
  %s1 = inlined_call_operand.hbm [shape: f32[16,32], index: 1, kind: output, shape index: {}]
  %s2 = sld [smem:[#allocation0]]
  $region6: #{tpu_custom_call.1} parent=0
    _
  %s4 = ssub.s32 1, %s2
  %s5 = scalar_select 0, %s4, %s2
  %s6 = scalar_lea.vmem %s0, 505
  // Predicated region
  $region2: #{tpu_custom_call.1} parent=0 // pred_check
    _
  $region3: #{tpu_custom_call.1} parent=0 // pred_check_branch
    %8 = sbr.rel target = $region5
  $region4: #{tpu_custom_call.1} parent=0 // pred_region
    %9 = sst [smem:[#allocation5]] [#allocation4]
    %10 = sst [smem:[#allocation6]] [#allocation3]
  $region5: #{tpu_custom_call.1} parent=0 // pred_fallthru
    _
  %12 = shalt.err (0)
  %s14 = sshll.u32 %s6, 4
  %s15 = int_to_ptr.vmem [resolvable:$true] %s14
  %s16 = sshll.u32 %s1, 4
  %s17 = int_to_ptr.hbm [resolvable:$true] %s16
  %19 = dma.vmem_to_hbm [thread:$0]  %s15, 256, %s17, [#allocation2]
  %s20 = smul.u32 16, 1
  %s21 = sshll.u32 %s20, 4
  %22 = dma.done [#allocation2], %s21
  %23 = vsyncmov [#allocation2]
  %s24 = vpop.sfrf %23
  %p25 = scmp.eq.s32.totalorder %s24, 0
  %p26 = pneg %p25
  %28 = shalt.err (%p26)

</llo_original>
